<compile_context>
chip_gen: v7x
topology: tpu7x:2x2x1
jax: 0.10.0
libtpu: 0.0.40
codegen_flags: <defaults>
</compile_context>

<pallas_src>
import jax
import jax.numpy as jnp
from jax.experimental import pallas as pl
from jax.experimental.pallas import tpu as pltpu


def _round_up(x, m):
    return (x + m - 1) // m * m


def _onehot_embed_kernel(pos_ids_ref, word_ids_ref,   # (bn, 1) int32 VMEM blocks
                         pos_tab_ref, word_tab_ref,   # (Vp, Dp) / (Vw, Dw) resident tables
                         pos_out_ref, word_out_ref):  # (bn, Dp) / (bn, Dw) outputs
    """Vectorized embedding lookup for one row block.

    one_hot(ids, V) @ table  ==  table[ids]   (exact for 0/1 one-hot)
    Two small MXU matmuls per block; no per-token scalar work, no masked
    per-row stores, no zero-fill.
    """
    bn = pos_out_ref.shape[0]
    vp = pos_tab_ref.shape[0]
    vw = word_tab_ref.shape[0]

    pos_ids = pos_ids_ref[...]            # (bn, 1) int32
    word_ids = word_ids_ref[...]          # (bn, 1) int32

    pos_oh = (jax.lax.broadcasted_iota(jnp.int32, (bn, vp), 1) == pos_ids
              ).astype(pos_tab_ref.dtype)
    word_oh = (jax.lax.broadcasted_iota(jnp.int32, (bn, vw), 1) == word_ids
               ).astype(word_tab_ref.dtype)

    pos_out_ref[...] = jnp.dot(
        pos_oh, pos_tab_ref[...],
        preferred_element_type=jnp.float32).astype(pos_out_ref.dtype)
    word_out_ref[...] = jnp.dot(
        word_oh, word_tab_ref[...],
        preferred_element_type=jnp.float32).astype(word_out_ref.dtype)


def pos_aware_lm_forward(pos_ids, word_ids, pos_table, word_table, *,
                         block_rows=2048):
    """Embed pos/word id streams (the defined part of POSAwareLM.forward).

    pos_ids, word_ids: (B, T) integer ids
    pos_table:  (pos_vocab,  pos_emb_dim)  float32
    word_table: (word_vocab, word_emb_dim) float32
    returns: pos_emb (B, T, pos_emb_dim), word_emb (B, T, word_emb_dim)
    """
    B, T = pos_ids.shape
    N = B * T
    Vp, Dp = pos_table.shape
    Vw, Dw = word_table.shape

    # Row tile: multiple of 8 (sublane), capped at block_rows; pad N up to it.
    bn = min(_round_up(block_rows, 8), _round_up(N, 8))
    Np = _round_up(N, bn)

    pos_flat = jnp.pad(pos_ids.reshape(N).astype(jnp.int32),
                       (0, Np - N)).reshape(Np, 1)
    word_flat = jnp.pad(word_ids.reshape(N).astype(jnp.int32),
                        (0, Np - N)).reshape(Np, 1)

    grid_spec = pltpu.PrefetchScalarGridSpec(
        num_scalar_prefetch=0,
        grid=(Np // bn,),
        in_specs=[
            # Per-step id blocks (scale to arbitrary N; no SMEM ceiling).
            pl.BlockSpec((bn, 1), lambda i: (i, 0)),
            pl.BlockSpec((bn, 1), lambda i: (i, 0)),
            # Tables: full-array blocks, constant block index -> stay resident.
            pl.BlockSpec((Vp, Dp), lambda i: (0, 0)),
            pl.BlockSpec((Vw, Dw), lambda i: (0, 0)),
        ],
        out_specs=[
            # Exact-shaped outputs: block last dim == full array dim, so no
            # 128-lane padding and no wrapper-side slice copies.
            pl.BlockSpec((bn, Dp), lambda i: (i, 0)),
            pl.BlockSpec((bn, Dw), lambda i: (i, 0)),
        ],
    )

    # VMEM budget: double-buffered id + output blocks (lane-padded to 128 in
    # VMEM), resident tables, one-hot intermediates, plus headroom.
    lane = 128
    pad = lambda d: _round_up(max(d, 1), lane)
    per_step = bn * 4 * (2 * pad(1) + pad(Dp) + pad(Dw))
    tables = 4 * (_round_up(Vp, 8) * pad(Dp) + _round_up(Vw, 8) * pad(Dw))
    onehot = bn * 4 * (pad(Vp) + pad(Vw))
    vmem_bytes = min(max(2 * per_step + tables + onehot + (4 << 20), 16 << 20),
                     64 << 20)

    # Memory-bound: ids in + embeddings out + tables read once; tiny matmuls.
    cost = pl.CostEstimate(
        flops=2 * Np * (Vp * Dp + Vw * Dw),
        transcendentals=0,
        bytes_accessed=(Np * 2 * 4                 # two int32 id streams
                        + Np * (Dp + Dw) * 4       # two output embeddings
                        + 4 * (Vp * Dp + Vw * Dw)  # tables once
                        ),
    )

    pos_e, word_e = pl.pallas_call(
        _onehot_embed_kernel,
        out_shape=(jax.ShapeDtypeStruct((Np, Dp), pos_table.dtype),
                   jax.ShapeDtypeStruct((Np, Dw), word_table.dtype)),
        grid_spec=grid_spec,
        compiler_params=pltpu.CompilerParams(
            dimension_semantics=("parallel",),   # shard rows over TCs (v7x)
            vmem_limit_bytes=vmem_bytes,
        ),
        cost_estimate=cost,
    )(pos_flat, word_flat, pos_table, word_table)

    pos_e = pos_e[:N].reshape(B, T, Dp)
    word_e = word_e[:N].reshape(B, T, Dw)

    # TODO(synk): the reference forward()/generate() (recurrent LSTM/GRU stack
    # over the concatenated embeddings plus the two softmax heads) raise
    # NotImplementedError in the PyTorch module, so there is nothing further
    # to translate.
    return pos_e, word_e


if __name__ == "__main__":
    # Module hyper-parameters (vocab=(pos_vocab, word_vocab), emb_dim=(pos, word))
    pos_vocab, word_vocab = 16, 32
    pos_emb_dim, word_emb_dim = 8, 32
    B, T = 2, 8

    key = jax.random.PRNGKey(0)
    k_pt, k_wt, k_pi, k_wi = jax.random.split(key, 4)

    # nn.Embedding default init: N(0, 1)
    pos_table = jax.random.normal(k_pt, (pos_vocab, pos_emb_dim), jnp.float32)
    word_table = jax.random.normal(k_wt, (word_vocab, word_emb_dim), jnp.float32)

    pos_ids = jax.random.randint(k_pi, (B, T), 0, pos_vocab, jnp.int32)
    word_ids = jax.random.randint(k_wi, (B, T), 0, word_vocab, jnp.int32)

    pos_e, word_e = pos_aware_lm_forward(pos_ids, word_ids, pos_table, word_table)
    jax.block_until_ready((pos_e, word_e))

    # Sanity check against plain-JAX embedding (gather) semantics.
    ref_pos = jnp.take(pos_table, pos_ids, axis=0)
    ref_word = jnp.take(word_table, word_ids, axis=0)
    assert pos_e.shape == (B, T, pos_emb_dim)
    assert word_e.shape == (B, T, word_emb_dim)
    assert jnp.allclose(pos_e, ref_pos, atol=1e-6), "pos embedding mismatch"
    assert jnp.allclose(word_e, ref_word, atol=1e-6), "word embedding mismatch"

    print("KERNEL_OK")
</pallas_src>

<mosaic_0001>
module attributes {stable_mosaic.version = 11 : i64} {
  func.func @_onehot_embed_kernel(%arg0: i32, %arg1: memref<16x1xi32, #tpu.memory_space<vmem>>, %arg2: memref<16x1xi32, #tpu.memory_space<vmem>>, %arg3: memref<16x8xf32, #tpu.memory_space<vmem>>, %arg4: memref<32x32xf32, #tpu.memory_space<vmem>>, %arg5: memref<16x8xf32, #tpu.memory_space<vmem>>, %arg6: memref<16x32xf32, #tpu.memory_space<vmem>>) attributes {dimension_semantics = [#tpu.dimension_semantics<parallel>], iteration_bounds = array<i64: 1>, scalar_prefetch = 0 : i64, scratch_operands = 0 : i64, tpu.core_type = #tpu.core_type<tc>, window_params = [{transform_indices = @transform_0, window_bounds = array<i64: 16, 1>}, {transform_indices = @transform_1, window_bounds = array<i64: 16, 1>}, {pipeline_mode = #tpu.pipeline_mode<synchronous>, transform_indices = @transform_2, window_bounds = array<i64: 16, 8>}, {pipeline_mode = #tpu.pipeline_mode<synchronous>, transform_indices = @transform_3, window_bounds = array<i64: 32, 32>}, {transform_indices = @transform_4, window_bounds = array<i64: 16, 8>}, {transform_indices = @transform_5, window_bounds = array<i64: 16, 32>}]} {
    %c0 = arith.constant 0 : index
    %c0_0 = arith.constant 0 : index
    %0 = vector.load %arg1[%c0, %c0_0] : memref<16x1xi32, #tpu.memory_space<vmem>>, vector<16x1xi32>
    %c0_1 = arith.constant 0 : index
    %c0_2 = arith.constant 0 : index
    %1 = vector.load %arg2[%c0_1, %c0_2] : memref<16x1xi32, #tpu.memory_space<vmem>>, vector<16x1xi32>
    %2 = tpu.iota {dimensions = array<i32: 1>} : vector<16x16xi32>
    %3 = vector.broadcast %0 : vector<16x1xi32> to vector<16x16xi32>
    %4 = arith.cmpi eq, %2, %3 : vector<16x16xi32>
    %5 = arith.extui %4 : vector<16x16xi1> to vector<16x16xi32>
    %6 = arith.sitofp %5 : vector<16x16xi32> to vector<16x16xf32>
    %7 = tpu.iota {dimensions = array<i32: 1>} : vector<16x32xi32>
    %8 = vector.broadcast %1 : vector<16x1xi32> to vector<16x32xi32>
    %9 = arith.cmpi eq, %7, %8 : vector<16x32xi32>
    %10 = arith.extui %9 : vector<16x32xi1> to vector<16x32xi32>
    %11 = arith.sitofp %10 : vector<16x32xi32> to vector<16x32xf32>
    %c0_3 = arith.constant 0 : index
    %c0_4 = arith.constant 0 : index
    %12 = vector.load %arg3[%c0_3, %c0_4] : memref<16x8xf32, #tpu.memory_space<vmem>>, vector<16x8xf32>
    %cst = arith.constant dense<0.000000e+00> : vector<16x8xf32>
    %13 = tpu.matmul %6, %12, %cst {dimension_numbers = #tpu.dot_dimension_numbers<[1], [0], [0], [1], [0, 0, 1, 1], [], []>} : vector<16x16xf32>, vector<16x8xf32>, vector<16x8xf32> -> vector<16x8xf32>
    %c0_5 = arith.constant 0 : index
    %c0_6 = arith.constant 0 : index
    %14 = vector.load %arg5[%c0_5, %c0_6] : memref<16x8xf32, #tpu.memory_space<vmem>>, vector<16x8xf32>
    tpu.vector_store %arg5[%c0_5, %c0_6], %13 {strides = array<i32>} : memref<16x8xf32, #tpu.memory_space<vmem>>, vector<16x8xf32>,
    %c0_7 = arith.constant 0 : index
    %c0_8 = arith.constant 0 : index
    %15 = vector.load %arg4[%c0_7, %c0_8] : memref<32x32xf32, #tpu.memory_space<vmem>>, vector<32x32xf32>
    %cst_9 = arith.constant dense<0.000000e+00> : vector<16x32xf32>
    %16 = tpu.matmul %11, %15, %cst_9 {dimension_numbers = #tpu.dot_dimension_numbers<[1], [0], [0], [1], [0, 0, 1, 1], [], []>} : vector<16x32xf32>, vector<32x32xf32>, vector<16x32xf32> -> vector<16x32xf32>
    %c0_10 = arith.constant 0 : index
    %c0_11 = arith.constant 0 : index
    %17 = vector.load %arg6[%c0_10, %c0_11] : memref<16x32xf32, #tpu.memory_space<vmem>>, vector<16x32xf32>
    tpu.vector_store %arg6[%c0_10, %c0_11], %16 {strides = array<i32>} : memref<16x32xf32, #tpu.memory_space<vmem>>, vector<16x32xf32>,
    return
  }
  func.func @transform_0(%arg0: i32) -> (i32, i32) {
    %c0_i32 = arith.constant 0 : i32
    %c0_i32_0 = arith.constant 0 : i32
    return %arg0, %c0_i32 : i32, i32
  }
  func.func @transform_1(%arg0: i32) -> (i32, i32) {
    %c0_i32 = arith.constant 0 : i32
    %c0_i32_0 = arith.constant 0 : i32
    return %arg0, %c0_i32 : i32, i32
  }
  func.func @transform_2(%arg0: i32) -> (i32, i32) {
    %c0_i32 = arith.constant 0 : i32
    %c0_i32_0 = arith.constant 0 : i32
    %c0_i32_1 = arith.constant 0 : i32
    return %c0_i32, %c0_i32_0 : i32, i32
  }
  func.func @transform_3(%arg0: i32) -> (i32, i32) {
    %c0_i32 = arith.constant 0 : i32
    %c0_i32_0 = arith.constant 0 : i32
    %c0_i32_1 = arith.constant 0 : i32
    return %c0_i32, %c0_i32_0 : i32, i32
  }
  func.func @transform_4(%arg0: i32) -> (i32, i32) {
    %c0_i32 = arith.constant 0 : i32
    %c0_i32_0 = arith.constant 0 : i32
    return %arg0, %c0_i32 : i32, i32
  }
  func.func @transform_5(%arg0: i32) -> (i32, i32) {
    %c0_i32 = arith.constant 0 : i32
    %c0_i32_0 = arith.constant 0 : i32
    return %arg0, %c0_i32 : i32, i32
  }
}

</mosaic_0001>

<llo_original>
// kernel: tpu_custom_call.1
$region0: #{tpu_custom_call.1}
  #allocation0 [shape = 'u32[]', space=smem, size = 0x4, offset = 0x4, fixed_abs, tag = 'smem constant byte address 0x4 - core index']
  #allocation1 [shape = 'u32[144,128]{1,0:T(1,128)}', space=vmem, size = 0x12000, scoped, tag = 'internal scratch']
  %s0 = inlined_call_operand.vmem [shape: s32[16,1], index: 0, kind: input, shape index: {}]
  %s1 = inlined_call_operand.vmem [shape: s32[16,1], index: 1, kind: input, shape index: {}]
  %s2 = inlined_call_operand.vmem [shape: f32[16,8], index: 2, kind: input, shape index: {}]
  %s3 = inlined_call_operand.vmem [shape: f32[32,32], index: 3, kind: input, shape index: {}]
  %s4 = inlined_call_operand.vmem [shape: f32[16,8], index: 4, kind: output, shape index: {0}]
  %s5 = inlined_call_operand.hbm [shape: f32[16,32], index: 5, kind: output, shape index: {1}]
  %6 = xla_tuple %s4, %s5
  %s7 = sld [smem:[#allocation0]]
  $region34: #{tpu_custom_call.1} parent=0
    _
  %s9 = ssub.s32 1, %s7
  %s10 = scalar_select 0, %s9, %s7
  $region1: #{tpu_custom_call.1} parent=0
    #allocation2 [shape = 'u8[8192]{0}', space=vmem, size = 0x2000, scoped, tag = 'output window, operand 1, single buffered']
    #allocation3 [shape = 's32[1]{0}', space=sflag, size = 0x4, scoped, tag = 'scoped memory for tpu_custom_call.1']
    %11 = vsyncpa [#allocation3], 0
    // Predicated region
    $region2: #{tpu_custom_call.1} parent=1 // pred_check
      _
    $region3: #{tpu_custom_call.1} parent=1 // pred_check_branch
      %13 = sbr.rel (0) target = $region5
    $region4: #{tpu_custom_call.1} parent=1 // pred_region
      _
    $region5: #{tpu_custom_call.1} parent=1 // pred_fallthru
      _
    // Predicated region
    $region6: #{tpu_custom_call.1} parent=1 // pred_check
      _
    $region7: #{tpu_custom_call.1} parent=1 // pred_check_branch
      %15 = sbr.rel (0) target = $region9
    $region8: #{tpu_custom_call.1} parent=1 // pred_region
      _
    $region9: #{tpu_custom_call.1} parent=1 // pred_fallthru
      _
    // Predicated region
    $region10: #{tpu_custom_call.1} parent=1 // pred_check
      _
    $region11: #{tpu_custom_call.1} parent=1 // pred_check_branch
      %17 = sbr.rel (0) target = $region13
    $region12: #{tpu_custom_call.1} parent=1 // pred_region
      _
    $region13: #{tpu_custom_call.1} parent=1 // pred_fallthru
      _
    // Predicated region
    $region14: #{tpu_custom_call.1} parent=1 // pred_check
      _
    $region15: #{tpu_custom_call.1} parent=1 // pred_check_branch
      %19 = sbr.rel (0) target = $region17
    $region16: #{tpu_custom_call.1} parent=1 // pred_region
      _
    $region17: #{tpu_custom_call.1} parent=1 // pred_fallthru
      _
    %v20 = vld [vmem:[%s0] sm:$0xff]
    %v21 = vld [vmem:[%s0 + $0x8] sm:$0xff]
    %v22 = vld [vmem:[%s1] sm:$0xff]
    %v23 = vld [vmem:[%s1 + $0x8] sm:$0xff]
    %v24 = vlaneseq
    %v25 = vand.u32 %v24, 127
    %26 = vset.pattern.permute.xlu0 0
    %27 = vperm.xlu0 %26, %v20
    %v28 = vpop.permute.xlu0 %27
    %29 = vset.pattern.permute.xlu0 0
    %30 = vperm.xlu0 %29, %v21
    %v31 = vpop.permute.xlu0 %30
    %vm32 = vcmp.eq.s32.totalorder %v25, %v28
    %vm33 = vcmp.eq.s32.totalorder %v25, %v31
    %v34 = vsel %vm32, 1, 0
    %v35 = vsel %vm33, 1, 0
    %v36 = vcvt.s32.f32 %v34
    %v37 = vcvt.s32.f32 %v35
    %38 = vset.pattern.permute.xlu0 0
    %39 = vperm.xlu0 %38, %v22
    %v40 = vpop.permute.xlu0 %39
    %41 = vset.pattern.permute.xlu0 0
    %42 = vperm.xlu0 %41, %v23
    %v43 = vpop.permute.xlu0 %42
    %vm44 = vcmp.eq.s32.totalorder %v25, %v40
    %vm45 = vcmp.eq.s32.totalorder %v25, %v43
    %v46 = vsel %vm44, 1, 0
    %v47 = vsel %vm45, 1, 0
    %v48 = vcvt.s32.f32 %v46
    %v49 = vcvt.s32.f32 %v47
    %v50 = vld [vmem:[%s2] sm:$0xff]
    %v51 = vld [vmem:[%s2 + $0x8] sm:$0xff]
    %vm52 = vcmask 130048
    %v54 = vsel %vm52, %v36, 0
    %v57 = vsel %vm52, %v37, 0
    %59 = vmatprep.subr.mxu0 0.0
    %60 = vmatpush1.msra.mxu0 %v50
    %61 = vmatprep.subr.mxu0 0.0
    %62 = vmatpush1.msra.mxu0 %v51
    %63 = vmatprep.subr.mxu0 0.0
    %64 = vmatpush1.msra.mxu0 0.0
    %65 = vmatprep.subr.mxu0 0.0
    %66 = vmatpush1.msra.mxu0 0.0
    %67 = vmatprep.subr.mxu0 0.0
    %68 = vmatpush1.msra.mxu0 0.0
    %69 = vmatprep.subr.mxu0 0.0
    %70 = vmatpush1.msra.mxu0 0.0
    %71 = vmatprep.subr.mxu0 0.0
    %72 = vmatpush1.msra.mxu0 0.0
    %73 = vmatprep.subr.mxu0 0.0
    %74 = vmatpush1.msra.mxu0 0.0
    %75 = vmatprep.subr.mxu0 0.0
    %76 = vmatpush1.msra.mxu0 0.0
    %77 = vmatprep.subr.mxu0 0.0
    %78 = vmatpush1.msra.mxu0 0.0
    %79 = vmatprep.subr.mxu0 0.0
    %80 = vmatpush1.msra.mxu0 0.0
    %81 = vmatprep.subr.mxu0 0.0
    %82 = vmatpush1.msra.mxu0 0.0
    %83 = vmatprep.subr.mxu0 0.0
    %84 = vmatpush1.msra.mxu0 0.0
    %85 = vmatprep.subr.mxu0 0.0
    %86 = vmatpush1.msra.mxu0 0.0
    %87 = vmatprep.subr.mxu0 0.0
    %88 = vmatpush1.msra.mxu0 0.0
    %89 = vmatprep.subr.mxu0 0.0
    %90 = vmatpush1.msra.mxu0 0.0
    %91 = vmatprep.subr.mxu0 0.0
    %92 = vmatpush1.msra.mxu0 0.0
    %93 = vmatprep.subr.mxu0 0.0
    %94 = vmatpush1.msra.mxu0 0.0
    %95 = vmatprep.subr.mxu0 0.0
    %96 = vmatpush1.msra.mxu0 0.0
    %97 = vmatprep.subr.mxu0 0.0
    %98 = vmatpush1.msra.mxu0 0.0
    %99 = vmatprep.subr.mxu0 0.0
    %100 = vmatpush1.msra.mxu0 0.0
    %101 = vmatprep.subr.mxu0 0.0
    %102 = vmatpush1.msra.mxu0 0.0
    %103 = vmatprep.subr.mxu0 0.0
    %104 = vmatpush1.msra.mxu0 0.0
    %105 = vmatprep.subr.mxu0 0.0
    %106 = vmatpush1.msra.mxu0 0.0
    %107 = vmatprep.subr.mxu0 0.0
    %108 = vmatpush1.msra.mxu0 0.0
    %109 = vmatprep.subr.mxu0 0.0
    %110 = vmatpush1.msra.mxu0 0.0
    %111 = vmatprep.subr.mxu0 0.0
    %112 = vmatpush1.msra.mxu0 0.0
    %113 = vmatprep.subr.mxu0 0.0
    %114 = vmatpush1.msra.mxu0 0.0
    %115 = vmatprep.subr.mxu0 0.0
    %116 = vmatpush1.msra.mxu0 0.0
    %117 = vmatprep.subr.mxu0 0.0
    %118 = vmatpush1.msra.mxu0 0.0
    %119 = vmatprep.subr.mxu0 0.0
    %120 = vmatpush1.msra.mxu0 0.0
    %121 = vmatprep.subr.mxu0 0.0
    %122 = vmatpush1.msra.mxu0 0.0
    %123 = vmatprep.mubr.f32.mxu0 0.0
    %124 = vmatmul.mubr.f32.gmra.mrb[0].mxu0 %v54
    %v125 = vpop.f32.mrb[0].mxu0
    %v126 = vadd.f32 0.0, %v125
    %v127 = vpop.f32.mrb[0].mxu0
    %128 = vmatprep.mubr.f32.mxu0 0.0
    %129 = vmatmul.mubr.f32.gmra.mrb[0].mxu0 %v57
    %v130 = vpop.f32.mrb[0].mxu0
    %v131 = vadd.f32 0.0, %v130
    %v132 = vpop.f32.mrb[0].mxu0
    %133 = vdwg.mxu0
    %vm134 = vcmask 64512
    %135 = vst.msk [vmem:[%s4] sm:$0xff] %vm134, %v126
    %136 = vst.msk [vmem:[%s4 + $0x8] sm:$0xff] %vm134, %v131
    %v137 = vld [vmem:[%s3] sm:$0xff]
    %v138 = vld [vmem:[%s3 + $0x8] sm:$0xff]
    %v139 = vld [vmem:[%s3 + $0x10] sm:$0xff]
    %v140 = vld [vmem:[%s3 + $0x18] sm:$0xff]
    %vm141 = vcmask 261120
    %v143 = vsel %vm141, %v48, 0
    %v146 = vsel %vm141, %v49, 0
    %148 = vmatprep.subr.mxu0 0.0
    %149 = vmatpush1.msra.mxu0 %v137
    %150 = vmatprep.subr.mxu0 0.0
    %151 = vmatpush1.msra.mxu0 %v138
    %152 = vmatprep.subr.mxu0 0.0
    %153 = vmatpush1.msra.mxu0 %v139
    %154 = vmatprep.subr.mxu0 0.0
    %155 = vmatpush1.msra.mxu0 %v140
    %156 = vmatprep.subr.mxu0 0.0
    %157 = vmatpush1.msra.mxu0 0.0
    %158 = vmatprep.subr.mxu0 0.0
    %159 = vmatpush1.msra.mxu0 0.0
    %160 = vmatprep.subr.mxu0 0.0
    %161 = vmatpush1.msra.mxu0 0.0
    %162 = vmatprep.subr.mxu0 0.0
    %163 = vmatpush1.msra.mxu0 0.0
    %164 = vmatprep.subr.mxu0 0.0
    %165 = vmatpush1.msra.mxu0 0.0
    %166 = vmatprep.subr.mxu0 0.0
    %167 = vmatpush1.msra.mxu0 0.0
    %168 = vmatprep.subr.mxu0 0.0
    %169 = vmatpush1.msra.mxu0 0.0
    %170 = vmatprep.subr.mxu0 0.0
    %171 = vmatpush1.msra.mxu0 0.0
    %172 = vmatprep.subr.mxu0 0.0
    %173 = vmatpush1.msra.mxu0 0.0
    %174 = vmatprep.subr.mxu0 0.0
    %175 = vmatpush1.msra.mxu0 0.0
    %176 = vmatprep.subr.mxu0 0.0
    %177 = vmatpush1.msra.mxu0 0.0
    %178 = vmatprep.subr.mxu0 0.0
    %179 = vmatpush1.msra.mxu0 0.0
    %180 = vmatprep.subr.mxu0 0.0
    %181 = vmatpush1.msra.mxu0 0.0
    %182 = vmatprep.subr.mxu0 0.0
    %183 = vmatpush1.msra.mxu0 0.0
    %184 = vmatprep.subr.mxu0 0.0
    %185 = vmatpush1.msra.mxu0 0.0
    %186 = vmatprep.subr.mxu0 0.0
    %187 = vmatpush1.msra.mxu0 0.0
    %188 = vmatprep.subr.mxu0 0.0
    %189 = vmatpush1.msra.mxu0 0.0
    %190 = vmatprep.subr.mxu0 0.0
    %191 = vmatpush1.msra.mxu0 0.0
    %192 = vmatprep.subr.mxu0 0.0
    %193 = vmatpush1.msra.mxu0 0.0
    %194 = vmatprep.subr.mxu0 0.0
    %195 = vmatpush1.msra.mxu0 0.0
    %196 = vmatprep.subr.mxu0 0.0
    %197 = vmatpush1.msra.mxu0 0.0
    %198 = vmatprep.subr.mxu0 0.0
    %199 = vmatpush1.msra.mxu0 0.0
    %200 = vmatprep.subr.mxu0 0.0
    %201 = vmatpush1.msra.mxu0 0.0
    %202 = vmatprep.subr.mxu0 0.0
    %203 = vmatpush1.msra.mxu0 0.0
    %204 = vmatprep.subr.mxu0 0.0
    %205 = vmatpush1.msra.mxu0 0.0
    %206 = vmatprep.subr.mxu0 0.0
    %207 = vmatpush1.msra.mxu0 0.0
    %208 = vmatprep.subr.mxu0 0.0
    %209 = vmatpush1.msra.mxu0 0.0
    %210 = vmatprep.subr.mxu0 0.0
    %211 = vmatpush1.msra.mxu0 0.0
    %212 = vmatprep.mubr.f32.mxu0 0.0
    %213 = vmatmul.mubr.f32.gmra.mrb[0].mxu0 %v143
    %v214 = vpop.f32.mrb[0].mxu0
    %v215 = vadd.f32 0.0, %v214
    %v216 = vpop.f32.mrb[0].mxu0
    %217 = vmatprep.mubr.f32.mxu0 0.0
    %218 = vmatmul.mubr.f32.gmra.mrb[0].mxu0 %v146
    %v219 = vpop.f32.mrb[0].mxu0
    %v220 = vadd.f32 0.0, %v219
    %v221 = vpop.f32.mrb[0].mxu0
    %222 = vdwg.mxu0
    %223 = vst.msk [vmem:[#allocation2] sm:$0xff] %vm141, %v215
    %224 = vst.msk [vmem:[#allocation2 + $0x8] sm:$0xff] %vm141, %v220
    // Predicated region
    $region18: #{tpu_custom_call.1} parent=1 // pred_check
      _
    $region19: #{tpu_custom_call.1} parent=1 // pred_check_branch
      %226 = sbr.rel (0) target = $region21
    $region20: #{tpu_custom_call.1} parent=1 // pred_region
      _
    $region21: #{tpu_custom_call.1} parent=1 // pred_fallthru
      _
    // Predicated region
    $region22: #{tpu_custom_call.1} parent=1 // pred_check
      _
    $region23: #{tpu_custom_call.1} parent=1 // pred_check_branch
      %228 = sbr.rel (0) target = $region25
    $region24: #{tpu_custom_call.1} parent=1 // pred_region
      %s230 = ssub.s32 256, 256
      %231 = vsyncadd [#allocation3], %s230
      %s232 = sshll.u32 [#allocation2], 4
      %s233 = int_to_ptr.vmem [resolvable:$true] %s232
      %238 = dma.vmem_to_hbm [thread:$0]  %s233, 256, %s5, [#allocation3], 128, 128, 8
    $region25: #{tpu_custom_call.1} parent=1 // pred_fallthru
      _
    // Predicated region
    $region26: #{tpu_custom_call.1} parent=1 // pred_check
      _
    $region27: #{tpu_custom_call.1} parent=1 // pred_check_branch
      %240 = sbr.rel (0) target = $region29
    $region28: #{tpu_custom_call.1} parent=1 // pred_region
      _
    $region29: #{tpu_custom_call.1} parent=1 // pred_fallthru
      _
    // Predicated region
    $region30: #{tpu_custom_call.1} parent=1 // pred_check
      _
    $region31: #{tpu_custom_call.1} parent=1 // pred_check_branch
      %242 = sbr.rel (0) target = $region33
    $region32: #{tpu_custom_call.1} parent=1 // pred_region
      %243 = dma.done [#allocation3], 256
    $region33: #{tpu_custom_call.1} parent=1 // pred_fallthru
      _
    %244 = vsyncpa [#allocation3], 1

</llo_original>
